<compile_context>
chip_gen: v7x
topology: tpu7x:2x2x1
jax: 0.10.0
libtpu: 0.0.40
codegen_flags: <defaults>
</compile_context>

<pallas_src>
import functools

import jax
import jax.numpy as jnp
from jax import lax
from jax.experimental import pallas as pl
from jax.experimental.pallas import tpu as pltpu

LANES = 128
SUBLANES = 8
TILE_ROWS_MAX = 2048   # 2048 x 128 f32 = 1 MiB per input block per buffer
NCORES = 2             # "parallel" leading grid axis (2 TensorCores on v7x)


def _dice_partial_kernel(x_ref, y_ref, oxy_ref, osum_ref, *,
                         tile_rows, k_steps, valid_rows, need_mask):
    c = pl.program_id(0)   # core-split index            ("parallel")
    j = pl.program_id(1)   # reduction step within core  ("arbitrary")

    @pl.when(j == 0)
    def _():
        oxy_ref[...] = jnp.zeros_like(oxy_ref)
        osum_ref[...] = jnp.zeros_like(osum_ref)

    x = x_ref[...].astype(jnp.float32)
    y = y_ref[...].astype(jnp.float32)

    def accumulate(xv, yv):
        # Pure-VPU partial sums into resident (8, 128) accumulators.
        xy = (xv * yv).reshape(tile_rows // SUBLANES, SUBLANES, LANES)
        s = (xv + yv).reshape(tile_rows // SUBLANES, SUBLANES, LANES)
        oxy_ref[...] += jnp.sum(xy, axis=0)
        osum_ref[...] += jnp.sum(s, axis=0)

    if need_mask:
        # Logical tile index (before index_map clamping) decides which rows
        # are real data; padded / duplicated rows contribute zero.
        row0 = (c * k_steps + j) * tile_rows
        is_full = row0 + tile_rows <= valid_rows

        @pl.when(is_full)
        def _():
            # Interior tiles: no mask cost, stays memory-bound.
            accumulate(x, y)

        @pl.when(jnp.logical_not(is_full))
        def _():
            # Boundary / duplicated tiles only: mask out invalid rows.
            row_ids = row0 + lax.broadcasted_iota(jnp.int32, (tile_rows, LANES), 0)
            valid = row_ids < valid_rows
            accumulate(jnp.where(valid, x, 0.0), jnp.where(valid, y, 0.0))
    else:
        accumulate(x, y)


def dice_loss(inputs, targets, smooth=1.0):
    """Pallas TPU implementation of DiceLoss.forward (returns a scalar)."""
    x = jnp.reshape(inputs, (-1,))
    y = jnp.reshape(targets, (-1,))
    # Stream native dtypes (bf16 / int8 / f32); only promote bool for layout.
    if x.dtype == jnp.bool_:
        x = x.astype(jnp.int8)
    if y.dtype == jnp.bool_:
        y = y.astype(jnp.int8)

    n = x.shape[0]
    chunk = SUBLANES * LANES                      # minimal 8x128 granularity
    pad = (-n) % chunk
    if pad:
        # Zero padding is benign for all three sums; only needed for odd sizes.
        x = jnp.pad(x, (0, pad))
        y = jnp.pad(y, (0, pad))

    rows = (n + pad) // LANES                     # multiple of 8
    x2 = x.reshape(rows, LANES)
    y2 = y.reshape(rows, LANES)

    tile_rows = min(TILE_ROWS_MAX, rows)          # multiple of 8
    n_tiles = (rows + tile_rows - 1) // tile_rows
    # Only split across cores when there is real work for both; otherwise the
    # second core would just re-read and mask out the whole input.
    ncores = NCORES if n_tiles >= NCORES else 1
    k_steps = (n_tiles + ncores - 1) // ncores
    need_mask = (rows % tile_rows != 0) or (n_tiles % ncores != 0)

    if need_mask:
        def in_map(c, j):
            # Clamp so out-of-range logical tiles re-read the last real tile;
            # the in-kernel row mask zeroes their contribution.
            return (jnp.minimum(c * k_steps + j, n_tiles - 1), 0)
    else:
        def in_map(c, j):
            return (c * k_steps + j, 0)

    kernel = functools.partial(
        _dice_partial_kernel,
        tile_rows=tile_rows,
        k_steps=k_steps,
        valid_rows=rows,
        need_mask=need_mask,
    )

    out_bytes = 2 * ncores * SUBLANES * LANES * 4
    cost = pl.CostEstimate(
        flops=5 * rows * LANES,
        transcendentals=0,
        bytes_accessed=(x2.size * x2.dtype.itemsize
                        + y2.size * y2.dtype.itemsize + out_bytes),
    )

    part_xy, part_sum = pl.pallas_call(
        kernel,
        out_shape=(
            jax.ShapeDtypeStruct((ncores, SUBLANES, LANES), jnp.float32),
            jax.ShapeDtypeStruct((ncores, SUBLANES, LANES), jnp.float32),
        ),
        grid_spec=pltpu.PrefetchScalarGridSpec(
            num_scalar_prefetch=0,
            grid=(ncores, k_steps),
            in_specs=[
                pl.BlockSpec((tile_rows, LANES), in_map),
                pl.BlockSpec((tile_rows, LANES), in_map),
            ],
            out_specs=(
                pl.BlockSpec((None, SUBLANES, LANES), lambda c, j: (c, 0, 0)),
                pl.BlockSpec((None, SUBLANES, LANES), lambda c, j: (c, 0, 0)),
            ),
        ),
        compiler_params=pltpu.CompilerParams(
            dimension_semantics=("parallel", "arbitrary"),
        ),
        cost_estimate=cost,
    )(x2, y2)

    # Tiny final combine (cross-core partials + dice formula) in plain JAX.
    inter = jnp.sum(part_xy)
    total = jnp.sum(part_sum)          # = sum(x) + sum(y)
    smooth = jnp.float32(smooth)
    dice = (2.0 * inter + smooth) / (total + smooth)
    return 1.0 - dice


if __name__ == "__main__":
    key = jax.random.PRNGKey(0)
    k1, k2 = jax.random.split(key)

    def ref_dice(xa, ta, smooth=1.0):
        xf = jnp.reshape(xa, (-1,)).astype(jnp.float32)
        tf = jnp.reshape(ta, (-1,)).astype(jnp.float32)
        inter = jnp.sum(xf * tf)
        return 1.0 - (2.0 * inter + smooth) / (jnp.sum(xf) + jnp.sum(tf) + smooth)

    # Small segmentation-style NCHW input.
    x = jax.nn.sigmoid(jax.random.normal(k1, (2, 4, 16, 16), dtype=jnp.float32))
    t = (jax.random.uniform(k2, (2, 4, 16, 16)) > 0.5).astype(jnp.float32)
    loss = dice_loss(x, t, smooth=1.0)
    jax.block_until_ready(loss)
    assert jnp.allclose(loss, ref_dice(x, t), atol=1e-5, rtol=1e-5), (loss, ref_dice(x, t))

    # Odd size (not a multiple of 1024) -> exercises padding + tail masking.
    k3, k4 = jax.random.split(k2)
    x2 = jax.nn.sigmoid(jax.random.normal(k3, (3, 5, 7, 11), dtype=jnp.float32))
    t2 = (jax.random.uniform(k4, (3, 5, 7, 11)) > 0.5).astype(jnp.float32)
    loss2 = dice_loss(x2, t2)
    jax.block_until_ready(loss2)
    assert jnp.allclose(loss2, ref_dice(x2, t2), atol=1e-5, rtol=1e-5)

    # Larger input -> exercises multi-tile grid, 2-way core split, partial-tile mask.
    k5, k6 = jax.random.split(k4)
    x3 = jax.nn.sigmoid(jax.random.normal(k5, (2, 4, 256, 257), dtype=jnp.float32))
    t3 = (jax.random.uniform(k6, (2, 4, 256, 257)) > 0.5).astype(jnp.float32)
    loss3 = dice_loss(x3, t3)
    jax.block_until_ready(loss3)
    assert jnp.allclose(loss3, ref_dice(x3, t3), atol=1e-4, rtol=1e-4)

    # Native-dtype streaming (bf16 activations) -> no wrapper upcast.
    loss_bf16 = dice_loss(x.astype(jnp.bfloat16), t)
    jax.block_until_ready(loss_bf16)
    assert jnp.allclose(loss_bf16, ref_dice(x, t), atol=2e-2, rtol=2e-2)

    print("KERNEL_OK")
</pallas_src>

<mosaic_0001>
module attributes {stable_mosaic.version = 11 : i64} {
  func.func @_dice_partial_kernel(%arg0: i32, %arg1: i32, %arg2: memref<16x128xf32, #tpu.memory_space<vmem>>, %arg3: memref<16x128xf32, #tpu.memory_space<vmem>>, %arg4: memref<1x8x128xf32, #tpu.memory_space<vmem>>, %arg5: memref<1x8x128xf32, #tpu.memory_space<vmem>>) attributes {dimension_semantics = [#tpu.dimension_semantics<parallel>, #tpu.dimension_semantics<arbitrary>], iteration_bounds = array<i64: 1, 1>, scalar_prefetch = 0 : i64, scratch_operands = 0 : i64, tpu.core_type = #tpu.core_type<tc>, window_params = [{transform_indices = @transform_0, window_bounds = array<i64: 16, 128>}, {transform_indices = @transform_1, window_bounds = array<i64: 16, 128>}, {transform_indices = @transform_2, window_bounds = array<i64: 1, 8, 128>}, {transform_indices = @transform_3, window_bounds = array<i64: 1, 8, 128>}]} {
    %c0_i32 = arith.constant 0 : i32
    %0 = arith.cmpi eq, %arg1, %c0_i32 : i32
    %1 = arith.extui %0 : i1 to i32
    %c0_i32_0 = arith.constant 0 : i32
    %2 = arith.cmpi ne, %1, %c0_i32_0 : i32
    scf.if %2 {
      %cst_17 = arith.constant 0.000000e+00 : f32
      %23 = vector.broadcast %cst_17 : f32 to vector<8x128xf32>
      %c0_18 = arith.constant 0 : index
      %c0_19 = arith.constant 0 : index
      %c0_20 = arith.constant 0 : index
      %24 = vector.load %arg4[%c0_18, %c0_19, %c0_20] : memref<1x8x128xf32, #tpu.memory_space<vmem>>, vector<1x8x128xf32>
      %25 = vector.shape_cast %24 : vector<1x8x128xf32> to vector<8x128xf32>
      %26 = vector.shape_cast %23 : vector<8x128xf32> to vector<1x8x128xf32>
      tpu.vector_store %arg4[%c0_18, %c0_19, %c0_20], %26 {strides = array<i32>} : memref<1x8x128xf32, #tpu.memory_space<vmem>>, vector<1x8x128xf32>,
      %cst_21 = arith.constant 0.000000e+00 : f32
      %27 = vector.broadcast %cst_21 : f32 to vector<8x128xf32>
      %c0_22 = arith.constant 0 : index
      %c0_23 = arith.constant 0 : index
      %c0_24 = arith.constant 0 : index
      %28 = vector.load %arg5[%c0_22, %c0_23, %c0_24] : memref<1x8x128xf32, #tpu.memory_space<vmem>>, vector<1x8x128xf32>
      %29 = vector.shape_cast %28 : vector<1x8x128xf32> to vector<8x128xf32>
      %30 = vector.shape_cast %27 : vector<8x128xf32> to vector<1x8x128xf32>
      tpu.vector_store %arg5[%c0_22, %c0_23, %c0_24], %30 {strides = array<i32>} : memref<1x8x128xf32, #tpu.memory_space<vmem>>, vector<1x8x128xf32>,
    } else {
    }
    %c0 = arith.constant 0 : index
    %c0_1 = arith.constant 0 : index
    %3 = vector.load %arg2[%c0, %c0_1] : memref<16x128xf32, #tpu.memory_space<vmem>>, vector<16x128xf32>
    %c0_2 = arith.constant 0 : index
    %c0_3 = arith.constant 0 : index
    %4 = vector.load %arg3[%c0_2, %c0_3] : memref<16x128xf32, #tpu.memory_space<vmem>>, vector<16x128xf32>
    %5 = arith.mulf %3, %4 : vector<16x128xf32>
    %6 = vector.shape_cast %5 : vector<16x128xf32> to vector<2x8x128xf32>
    %7 = arith.addf %3, %4 : vector<16x128xf32>
    %8 = vector.shape_cast %7 : vector<16x128xf32> to vector<2x8x128xf32>
    %c0_4 = arith.constant 0 : index
    %c0_5 = arith.constant 0 : index
    %c0_6 = arith.constant 0 : index
    %9 = vector.load %arg4[%c0_4, %c0_5, %c0_6] : memref<1x8x128xf32, #tpu.memory_space<vmem>>, vector<1x8x128xf32>
    %10 = vector.shape_cast %9 : vector<1x8x128xf32> to vector<8x128xf32>
    %cst = arith.constant dense<0.000000e+00> : vector<8x128xf32>
    %11 = vector.multi_reduction <add>, %6, %cst [0] : vector<2x8x128xf32> to vector<8x128xf32>
    %12 = arith.addf %10, %11 : vector<8x128xf32>
    %c0_7 = arith.constant 0 : index
    %c0_8 = arith.constant 0 : index
    %c0_9 = arith.constant 0 : index
    %13 = vector.load %arg4[%c0_7, %c0_8, %c0_9] : memref<1x8x128xf32, #tpu.memory_space<vmem>>, vector<1x8x128xf32>
    %14 = vector.shape_cast %13 : vector<1x8x128xf32> to vector<8x128xf32>
    %15 = vector.shape_cast %12 : vector<8x128xf32> to vector<1x8x128xf32>
    tpu.vector_store %arg4[%c0_7, %c0_8, %c0_9], %15 {strides = array<i32>} : memref<1x8x128xf32, #tpu.memory_space<vmem>>, vector<1x8x128xf32>,
    %c0_10 = arith.constant 0 : index
    %c0_11 = arith.constant 0 : index
    %c0_12 = arith.constant 0 : index
    %16 = vector.load %arg5[%c0_10, %c0_11, %c0_12] : memref<1x8x128xf32, #tpu.memory_space<vmem>>, vector<1x8x128xf32>
    %17 = vector.shape_cast %16 : vector<1x8x128xf32> to vector<8x128xf32>
    %cst_13 = arith.constant dense<0.000000e+00> : vector<8x128xf32>
    %18 = vector.multi_reduction <add>, %8, %cst_13 [0] : vector<2x8x128xf32> to vector<8x128xf32>
    %19 = arith.addf %17, %18 : vector<8x128xf32>
    %c0_14 = arith.constant 0 : index
    %c0_15 = arith.constant 0 : index
    %c0_16 = arith.constant 0 : index
    %20 = vector.load %arg5[%c0_14, %c0_15, %c0_16] : memref<1x8x128xf32, #tpu.memory_space<vmem>>, vector<1x8x128xf32>
    %21 = vector.shape_cast %20 : vector<1x8x128xf32> to vector<8x128xf32>
    %22 = vector.shape_cast %19 : vector<8x128xf32> to vector<1x8x128xf32>
    tpu.vector_store %arg5[%c0_14, %c0_15, %c0_16], %22 {strides = array<i32>} : memref<1x8x128xf32, #tpu.memory_space<vmem>>, vector<1x8x128xf32>,
    return
  }
  func.func @transform_0(%arg0: i32, %arg1: i32) -> (i32, i32) {
    %c1_i32 = arith.constant 1 : i32
    %0 = arith.muli %arg0, %c1_i32 : i32
    %1 = arith.addi %0, %arg1 : i32
    %c0_i32 = arith.constant 0 : i32
    %c0_i32_0 = arith.constant 0 : i32
    return %1, %c0_i32 : i32, i32
  }
  func.func @transform_1(%arg0: i32, %arg1: i32) -> (i32, i32) {
    %c1_i32 = arith.constant 1 : i32
    %0 = arith.muli %arg0, %c1_i32 : i32
    %1 = arith.addi %0, %arg1 : i32
    %c0_i32 = arith.constant 0 : i32
    %c0_i32_0 = arith.constant 0 : i32
    return %1, %c0_i32 : i32, i32
  }
  func.func @transform_2(%arg0: i32, %arg1: i32) -> (i32, i32, i32) {
    %c0_i32 = arith.constant 0 : i32
    %c0_i32_0 = arith.constant 0 : i32
    %c0_i32_1 = arith.constant 0 : i32
    return %arg0, %c0_i32, %c0_i32_0 : i32, i32, i32
  }
  func.func @transform_3(%arg0: i32, %arg1: i32) -> (i32, i32, i32) {
    %c0_i32 = arith.constant 0 : i32
    %c0_i32_0 = arith.constant 0 : i32
    %c0_i32_1 = arith.constant 0 : i32
    return %arg0, %c0_i32, %c0_i32_0 : i32, i32, i32
  }
}

</mosaic_0001>

<llo_original>
// kernel: tpu_custom_call.1
$region0: #{tpu_custom_call.1}
  #allocation0 [shape = 'u32[]', space=smem, size = 0x4, offset = 0x4, fixed_abs, tag = 'smem constant byte address 0x4 - core index']
  #allocation1 [shape = 'u32[144,128]{1,0:T(1,128)}', space=vmem, size = 0x12000, scoped, tag = 'internal scratch']
  %s0 = inlined_call_operand.hbm [shape: f32[16,128], index: 0, kind: input, shape index: {}]
  %s1 = inlined_call_operand.hbm [shape: f32[16,128], index: 1, kind: input, shape index: {}]
  %s2 = inlined_call_operand.hbm [shape: f32[1,8,128], index: 2, kind: output, shape index: {0}]
  %s3 = inlined_call_operand.hbm [shape: f32[1,8,128], index: 3, kind: output, shape index: {1}]
  %4 = xla_tuple %s2, %s3
  %s5 = sld [smem:[#allocation0]]
  $region38: #{tpu_custom_call.1} parent=0
    _
  %s7 = ssub.s32 1, %s5
  %s8 = scalar_select 0, %s7, %s5
  $region1: #{tpu_custom_call.1} parent=0
    #allocation2 [shape = 'u8[8192]{0}', space=vmem, size = 0x2000, scoped, tag = 'input window, operand 0, single buffered']
    #allocation3 [shape = 's32[1]{0}', space=sflag, size = 0x4, scoped, tag = 'scoped memory for tpu_custom_call.1']
    #allocation4 [shape = 's32[1]{0}', space=sflag, size = 0x4, scoped, tag = 'scoped memory for tpu_custom_call.1']
    #allocation5 [shape = 'u8[8192]{0}', space=vmem, size = 0x2000, scoped, tag = 'input window, operand 1, single buffered']
    #allocation6 [shape = 's32[1]{0}', space=sflag, size = 0x4, scoped, tag = 'scoped memory for tpu_custom_call.1']
    #allocation7 [shape = 'u8[4096]{0}', space=vmem, size = 0x1000, scoped, tag = 'output window, operand 0, single buffered']
    #allocation8 [shape = 'u8[4096]{0}', space=vmem, size = 0x1000, scoped, tag = 'output window, operand 1, single buffered']
    #allocation9 [shape = 's32[1]{0}', space=sflag, size = 0x4, scoped, tag = 'scoped memory for tpu_custom_call.1']
    %9 = vsyncpa [#allocation3], 0
    %10 = vsyncpa [#allocation6], 0
    %11 = vsyncpa [#allocation4], 0
    %12 = vsyncpa [#allocation9], 0
    // Predicated region
    $region2: #{tpu_custom_call.1} parent=1 // pred_check
      _
    $region3: #{tpu_custom_call.1} parent=1 // pred_check_branch
      %14 = sbr.rel (0) target = $region5
    $region4: #{tpu_custom_call.1} parent=1 // pred_region
      %s15 = sadd.s32 0, 0
      %s16 = smul.u32 2, %s15
      %s18 = ssub.s32 256, 256
      %19 = vsyncadd [#allocation3], %s18
      %s20 = smul.addr %s16, 128
      %s21 = scalar_lea.hbm %s0, %s20
      %s22 = sshll.u32 [#allocation2], 4
      %s23 = int_to_ptr.vmem [resolvable:$true] %s22
      %28 = dma.hbm_to_vmem [thread:$0]  %s21, 256, %s23, [#allocation3], 128, 128, 8
    $region5: #{tpu_custom_call.1} parent=1 // pred_fallthru
      _
    // Predicated region
    $region6: #{tpu_custom_call.1} parent=1 // pred_check
      _
    $region7: #{tpu_custom_call.1} parent=1 // pred_check_branch
      %30 = sbr.rel (0) target = $region9
    $region8: #{tpu_custom_call.1} parent=1 // pred_region
      %s31 = sadd.s32 0, 0
      %s32 = smul.u32 2, %s31
      %s34 = ssub.s32 256, 256
      %35 = vsyncadd [#allocation6], %s34
      %s36 = smul.addr %s32, 128
      %s37 = scalar_lea.hbm %s1, %s36
      %s38 = sshll.u32 [#allocation5], 4
      %s39 = int_to_ptr.vmem [resolvable:$true] %s38
      %44 = dma.hbm_to_vmem [thread:$0]  %s37, 256, %s39, [#allocation6], 128, 128, 8
    $region9: #{tpu_custom_call.1} parent=1 // pred_fallthru
      _
    // Predicated region
    $region10: #{tpu_custom_call.1} parent=1 // pred_check
      _
    $region11: #{tpu_custom_call.1} parent=1 // pred_check_branch
      %46 = sbr.rel (0) target = $region13
    $region12: #{tpu_custom_call.1} parent=1 // pred_region
      %47 = dma.done [#allocation3], 256
    $region13: #{tpu_custom_call.1} parent=1 // pred_fallthru
      _
    // Predicated region
    $region14: #{tpu_custom_call.1} parent=1 // pred_check
      _
    $region15: #{tpu_custom_call.1} parent=1 // pred_check_branch
      %49 = sbr.rel (0) target = $region17
    $region16: #{tpu_custom_call.1} parent=1 // pred_region
      %50 = dma.done [#allocation6], 256
    $region17: #{tpu_custom_call.1} parent=1 // pred_fallthru
      _
    %s51 = sadd.s32 0, 0
    %s52 = smul.u32 2, %s51
    %s53 = sadd.s32 0, 0
    %s54 = smul.u32 2, %s53
    %p55 = scmp.eq.s32.totalorder 0, 0
    // Predicated region
    $region18: #{tpu_custom_call.1} parent=1 // pred_check
      %p56 = pneg %p55
    $region19: #{tpu_custom_call.1} parent=1 // pred_check_branch
      %58 = sbr.rel (%p56) target = $region21
    $region20: #{tpu_custom_call.1} parent=1 // pred_region
      %59 = vst [vmem:[#allocation7] sm:$0xff] 0.0
      %60 = vst [vmem:[#allocation8] sm:$0xff] 0.0
    $region21: #{tpu_custom_call.1} parent=1 // pred_fallthru
      _
    %v61 = vld [vmem:[#allocation2] sm:$0xff]
    %v62 = vld [vmem:[#allocation2 + $0x8] sm:$0xff]
    %v63 = vld [vmem:[#allocation5] sm:$0xff]
    %v64 = vld [vmem:[#allocation5 + $0x8] sm:$0xff]
    %v65 = vmul.f32 %v61, %v63
    %v66 = vmul.f32 %v62, %v64
    %v67 = vadd.f32 %v61, %v63
    %v68 = vadd.f32 %v62, %v64
    %v69 = vld [vmem:[#allocation7] sm:$0xff]
    %v70 = vadd.f32 %v65, %v66
    %v71 = vadd.f32 %v69, %v70
    %72 = vst [vmem:[#allocation7] sm:$0xff] %v71
    %v73 = vld [vmem:[#allocation8] sm:$0xff]
    %v74 = vadd.f32 %v67, %v68
    %v75 = vadd.f32 %v73, %v74
    %76 = vst [vmem:[#allocation8] sm:$0xff] %v75
    // Predicated region
    $region22: #{tpu_custom_call.1} parent=1 // pred_check
      _
    $region23: #{tpu_custom_call.1} parent=1 // pred_check_branch
      %78 = sbr.rel (0) target = $region25
    $region24: #{tpu_custom_call.1} parent=1 // pred_region
      %s80 = ssub.s32 128, 128
      %81 = vsyncadd [#allocation4], %s80
      %s83 = sshll.u32 [#allocation7], 4
      %s84 = int_to_ptr.vmem [resolvable:$true] %s83
      %86 = dma.vmem_to_hbm [thread:$0]  %s84, 128, %s2, [#allocation4]
    $region25: #{tpu_custom_call.1} parent=1 // pred_fallthru
      _
    // Predicated region
    $region26: #{tpu_custom_call.1} parent=1 // pred_check
      _
    $region27: #{tpu_custom_call.1} parent=1 // pred_check_branch
      %88 = sbr.rel (0) target = $region29
    $region28: #{tpu_custom_call.1} parent=1 // pred_region
      %s90 = ssub.s32 128, 128
      %91 = vsyncadd [#allocation9], %s90
      %s93 = sshll.u32 [#allocation8], 4
      %s94 = int_to_ptr.vmem [resolvable:$true] %s93
      %96 = dma.vmem_to_hbm [thread:$0]  %s94, 128, %s3, [#allocation9]
    $region29: #{tpu_custom_call.1} parent=1 // pred_fallthru
      _
    // Predicated region
    $region30: #{tpu_custom_call.1} parent=1 // pred_check
      _
    $region31: #{tpu_custom_call.1} parent=1 // pred_check_branch
      %98 = sbr.rel (0) target = $region33
    $region32: #{tpu_custom_call.1} parent=1 // pred_region
      %99 = dma.done [#allocation4], 128
    $region33: #{tpu_custom_call.1} parent=1 // pred_fallthru
      _
    // Predicated region
    $region34: #{tpu_custom_call.1} parent=1 // pred_check
      _
    $region35: #{tpu_custom_call.1} parent=1 // pred_check_branch
      %101 = sbr.rel (0) target = $region37
    $region36: #{tpu_custom_call.1} parent=1 // pred_region
      %102 = dma.done [#allocation9], 128
    $region37: #{tpu_custom_call.1} parent=1 // pred_fallthru
      _
    %103 = vsyncpa [#allocation3], 1
    %104 = vsyncpa [#allocation6], 1
    %105 = vsyncpa [#allocation4], 1
    %106 = vsyncpa [#allocation9], 1

</llo_original>
